<compile_context>
chip_gen: v5e
topology: v5e:2x2
jax: 0.10.0
libtpu: 0.0.40
codegen_flags: <defaults>
</compile_context>

<pallas_src>
import functools
import numpy as np
import jax
import jax.numpy as jnp
from jax import lax
from jax.experimental import pallas as pl
from jax.experimental.pallas import tpu as pltpu


# ----------------------------- Pallas kernels -----------------------------

def _bf16(x):
    return x.astype(jnp.bfloat16)


def _enc_s2g_kernel(x_ref, ew1, eb1, ew2, eb2, sw1, sb1, sw2, sb2,
                    enc_ref, raw_ref, nrm_ref):
    """Stub SMILES encoder MLP followed by mapping_s2g, with fused L2-norm epilogue."""
    x = x_ref[...]
    h = jnp.dot(_bf16(x), _bf16(ew1[...]), preferred_element_type=jnp.float32) + eb1[...]
    h = jnp.maximum(h, 0.0)
    e = jnp.dot(_bf16(h), _bf16(ew2[...]), preferred_element_type=jnp.float32) + eb2[...]
    enc_ref[...] = e
    g = jnp.dot(_bf16(e), _bf16(sw1[...]), preferred_element_type=jnp.float32) + sb1[...]
    g = jnp.where(g > 0, g, 0.01 * g)                                   # LeakyReLU
    zz = jnp.dot(_bf16(g), _bf16(sw2[...]), preferred_element_type=jnp.float32) + sb2[...]
    raw_ref[...] = zz
    nrm = jnp.sqrt(jnp.sum(zz * zz, axis=-1, keepdims=True))
    nrm_ref[...] = zz / (nrm + 1e-10)


def enc_s2g(x, p):
    N, D = x.shape
    DM = p["s2g_w2"].shape[1]
    TR = 256 if (N > 256 and N % 256 == 0) else N     # row tile; full slab at toy sizes
    wspec = lambda shape: pl.BlockSpec(shape, lambda i: (0, 0))
    return pl.pallas_call(
        _enc_s2g_kernel,
        out_shape=(jax.ShapeDtypeStruct((N, D), jnp.float32),
                   jax.ShapeDtypeStruct((N, DM), jnp.float32),
                   jax.ShapeDtypeStruct((N, DM), jnp.float32)),
        grid=(N // TR,),
        in_specs=[pl.BlockSpec((TR, D), lambda i: (i, 0)),
                  wspec((D, D)), wspec((1, D)), wspec((D, D)), wspec((1, D)),
                  wspec((D, D)), wspec((1, D)), wspec((D, DM)), wspec((1, DM))],
        out_specs=(pl.BlockSpec((TR, D), lambda i: (i, 0)),
                   pl.BlockSpec((TR, DM), lambda i: (i, 0)),
                   pl.BlockSpec((TR, DM), lambda i: (i, 0))),
        compiler_params=pltpu.CompilerParams(dimension_semantics=("parallel",)),
    )(x, p["enc_w1"], p["enc_b1"].reshape(1, -1), p["enc_w2"], p["enc_b2"].reshape(1, -1),
      p["s2g_w1"], p["s2g_b1"].reshape(1, -1), p["s2g_w2"], p["s2g_b2"].reshape(1, -1))


def _dec_head_kernel(x_ref, w1, b1, w2, b2, wp, bp, o_ref):
    x = x_ref[...]
    h = jnp.maximum(
        jnp.dot(_bf16(x), _bf16(w1[...]), preferred_element_type=jnp.float32) + b1[...], 0.0)
    d = jnp.dot(_bf16(h), _bf16(w2[...]), preferred_element_type=jnp.float32) + b2[...]
    o_ref[...] = jnp.dot(_bf16(d), _bf16(wp[...]), preferred_element_type=jnp.float32) + bp[...]


def dec_head(x, p):
    N, _ = x.shape
    V = p["word_pred_w"].shape[1]
    return pl.pallas_call(
        _dec_head_kernel,
        out_shape=jax.ShapeDtypeStruct((N, V), jnp.float32),
    )(x, p["dec_w1"], p["dec_b1"].reshape(1, -1), p["dec_w2"], p["dec_b2"].reshape(1, -1),
      p["word_pred_w"], p["word_pred_b"].reshape(1, -1))


def _prop_branch_kernel(xt_ref, m_ref,
                        pw1, pb1, pw2, pb2, seg,
                        gw1, gb1, gw2, gb2,
                        hw1, hb1, hw2, hb2,
                        tok_ref, glob_ref):
    """Fused: prop-encoder MLP + seg, masked-mean 'attention' pooling,
    mapping_g2s (token features) and mapping_g2s2 (pooled features), with L2 norms."""
    x = xt_ref[0]                                                       # (P, D)
    h = jnp.maximum(
        jnp.dot(_bf16(x), _bf16(pw1[...]), preferred_element_type=jnp.float32) + pb1[...], 0.0)
    xxt = (jnp.dot(_bf16(h), _bf16(pw2[...]), preferred_element_type=jnp.float32)
           + pb2[...] + seg[...])                                       # (P, D)

    # TODO(synk): nn.MultiheadAttention with an all-ones query stubbed as masked mean pooling
    w = 1.0 - m_ref[0]                                                  # (1, P)
    denom = jnp.sum(w, axis=1, keepdims=True) + 1e-8
    v = jnp.dot(w, xxt, preferred_element_type=jnp.float32) / denom     # (1, D)

    # mapping_g2s + fused L2 norm
    g1 = jnp.dot(_bf16(xxt), _bf16(gw1[...]), preferred_element_type=jnp.float32) + gb1[...]
    g1 = jnp.where(g1 > 0, g1, 0.01 * g1)
    vc = jnp.dot(_bf16(g1), _bf16(gw2[...]), preferred_element_type=jnp.float32) + gb2[...]
    n1 = jnp.sqrt(jnp.sum(vc * vc, axis=-1, keepdims=True))
    tok_ref[...] = (vc / (n1 + 1e-10))[None]                            # (1, P, DM)

    # mapping_g2s2 + fused L2 norm
    g2 = jnp.dot(_bf16(v), _bf16(hw1[...]), preferred_element_type=jnp.float32) + hb1[...]
    g2 = jnp.where(g2 > 0, g2, 0.01 * g2)
    vcv = jnp.dot(_bf16(g2), _bf16(hw2[...]), preferred_element_type=jnp.float32) + hb2[...]
    n2 = jnp.sqrt(jnp.sum(vcv * vcv, axis=-1, keepdims=True))
    glob_ref[...] = (vcv / (n2 + 1e-10))[None]                          # (1, 1, DM)


def property_branch(xt_cat, mpm_cat, p):
    N, P, D = xt_cat.shape
    DM = p["g2s_w2"].shape[1]
    wspec = lambda shape: pl.BlockSpec(shape, lambda i: (0, 0))
    tok, glob = pl.pallas_call(
        _prop_branch_kernel,
        out_shape=(jax.ShapeDtypeStruct((N, P, DM), jnp.float32),
                   jax.ShapeDtypeStruct((N, 1, DM), jnp.float32)),
        grid=(N,),
        in_specs=[pl.BlockSpec((1, P, D), lambda i: (i, 0, 0)),
                  pl.BlockSpec((1, 1, P), lambda i: (i, 0, 0)),
                  wspec((D, D)), wspec((1, D)), wspec((D, D)), wspec((1, D)), wspec((1, D)),
                  wspec((D, D)), wspec((1, D)), wspec((D, DM)), wspec((1, DM)),
                  wspec((D, D)), wspec((1, D)), wspec((D, DM)), wspec((1, DM))],
        out_specs=(pl.BlockSpec((1, P, DM), lambda i: (i, 0, 0)),
                   pl.BlockSpec((1, 1, DM), lambda i: (i, 0, 0))),
        compiler_params=pltpu.CompilerParams(dimension_semantics=("parallel",)),
    )(xt_cat, mpm_cat.reshape(N, 1, P),
      p["prop_enc_w1"], p["prop_enc_b1"].reshape(1, -1),
      p["prop_enc_w2"], p["prop_enc_b2"].reshape(1, -1),
      p["pp_seg"].reshape(1, -1),
      p["g2s_w1"], p["g2s_b1"].reshape(1, -1), p["g2s_w2"], p["g2s_b2"].reshape(1, -1),
      p["g2s2_w1"], p["g2s2_b1"].reshape(1, -1), p["g2s2_w2"], p["g2s2_b2"].reshape(1, -1))
    return tok, glob[:, 0, :]


def _gram_kernel(x_ref, scale_ref, o_ref):
    x = _bf16(x_ref[...])
    g = lax.dot_general(x, x, (((1,), (1,)), ((), ())),
                        preferred_element_type=jnp.float32)
    o_ref[...] = scale_ref[0, 0] * g


def gram_logits(x, scale):
    """scale * X @ X.T — replaces the 8 separate CLIP logits matmuls."""
    n = x.shape[0]
    return pl.pallas_call(
        _gram_kernel,
        out_shape=jax.ShapeDtypeStruct((n, n), jnp.float32),
        in_specs=[pl.BlockSpec(memory_space=pltpu.MemorySpace.VMEM),
                  pl.BlockSpec(memory_space=pltpu.MemorySpace.SMEM)],
        out_specs=pl.BlockSpec(memory_space=pltpu.MemorySpace.VMEM),
    )(x, scale.reshape(1, 1).astype(jnp.float32))


def _frag_pool_kernel(w_ref, x_ref, cnt_ref, o_ref):
    acc = jnp.dot(_bf16(w_ref[0]), _bf16(x_ref[0]),
                  preferred_element_type=jnp.float32)                   # (Nf, DM)
    fe = acc / (cnt_ref[0] + 1e-8)
    nrm = jnp.sqrt(jnp.sum(fe * fe, axis=-1, keepdims=True))
    o_ref[...] = (fe / (nrm + 1e-10))[None]                             # fused L2 norm


def frag_pool(w, x, cnt):
    Bn, Nf, S = w.shape
    DM = x.shape[-1]
    return pl.pallas_call(
        _frag_pool_kernel,
        out_shape=jax.ShapeDtypeStruct((Bn, Nf, DM), jnp.float32),
        grid=(Bn,),
        in_specs=[pl.BlockSpec((1, Nf, S), lambda i: (i, 0, 0)),
                  pl.BlockSpec((1, S, DM), lambda i: (i, 0, 0)),
                  pl.BlockSpec((1, Nf, 1), lambda i: (i, 0, 0))],
        out_specs=pl.BlockSpec((1, Nf, DM), lambda i: (i, 0, 0)),
        compiler_params=pltpu.CompilerParams(dimension_semantics=("parallel",)),
    )(w, x, cnt)


def _bi_sim_kernel(a_ref, c_ref, scale_ref, fwd_ref, bwd_ref, *, b2, m):
    """One (L, D) x (D, B2*M) matmul; emit both mean_L(max_M) and mean_M(max_L) rows."""
    a = _bf16(a_ref[0])                                                 # (L, DM)
    c = _bf16(c_ref[...])                                               # (B2*M, DM)
    s = lax.dot_general(a, c, (((1,), (1,)), ((), ())),
                        preferred_element_type=jnp.float32)             # (L, B2*M)
    l = s.shape[0]
    gid = lax.broadcasted_iota(jnp.int32, (l, b2 * m), 1) // m          # lane -> right-batch id
    gid_row = gid[:1]
    col_max = jnp.max(s, axis=0, keepdims=True)                         # (1, B2*M) max over L
    neg = jnp.float32(-1e30)
    fwd_cols, bwd_cols = [], []
    for j in range(b2):
        # forward: mean over L of (max over this group's M lanes)
        gmax = jnp.max(jnp.where(gid == j, s, neg), axis=1, keepdims=True)      # (L, 1)
        fwd_cols.append(jnp.mean(gmax, axis=0, keepdims=True))                  # (1, 1)
        # backward: mean over this group's M lanes of (max over L)
        gsum = jnp.sum(jnp.where(gid_row == j, col_max, 0.0), axis=1, keepdims=True)
        bwd_cols.append(gsum / m)                                               # (1, 1)
    scale = scale_ref[0, 0]                                             # scale hoisted
    fwd_ref[...] = (scale * jnp.concatenate(fwd_cols, axis=1)).reshape(1, 1, b2)
    bwd_ref[...] = (scale * jnp.concatenate(bwd_cols, axis=1)).reshape(1, 1, b2)


def bidirectional_masked_similarity(a, c, scale):
    """a: (A, L, D), c: (B2, M, D) ->
       fwd[i, j]  = scale * mean_L max_M <a_i, c_j>     (== masked_similarity(a, c))
       bwdT[i, j] = scale * mean_M max_L <a_i, c_j>     (== masked_similarity(c, a).T)"""
    A, L, DM = a.shape
    B2, M, _ = c.shape
    fwd, bwdt = pl.pallas_call(
        functools.partial(_bi_sim_kernel, b2=B2, m=M),
        out_shape=(jax.ShapeDtypeStruct((A, 1, B2), jnp.float32),
                   jax.ShapeDtypeStruct((A, 1, B2), jnp.float32)),
        grid=(A,),
        in_specs=[pl.BlockSpec((1, L, DM), lambda i: (i, 0, 0)),
                  pl.BlockSpec((B2 * M, DM), lambda i: (0, 0)),
                  pl.BlockSpec(memory_space=pltpu.MemorySpace.SMEM)],
        out_specs=(pl.BlockSpec((1, 1, B2), lambda i: (i, 0, 0)),
                   pl.BlockSpec((1, 1, B2), lambda i: (i, 0, 0))),
        compiler_params=pltpu.CompilerParams(dimension_semantics=("parallel",)),
    )(a, c.reshape(B2 * M, DM), scale.reshape(1, 1).astype(jnp.float32))
    return fwd[:, 0, :], bwdt[:, 0, :]


# ----------------------------- parameter setup -----------------------------

def make_pos_encoding(max_len, d):
    pos = np.arange(max_len)[:, None].astype(np.float32)
    div = np.exp(np.arange(0, d, 2).astype(np.float32) * (-np.log(10000.0) / d))
    pe = np.zeros((max_len, d), np.float32)
    pe[:, 0::2] = np.sin(pos * div)
    pe[:, 1::2] = np.cos(pos * div)
    return jnp.asarray(pe)


def make_params():
    D, DM, V, MAXLEN = 32, 128, 16, 16
    key = jax.random.PRNGKey(0)
    ks = list(jax.random.split(key, 20))

    def nrm(k, shape, s=0.1):
        return jax.random.normal(k, shape, jnp.float32) * s

    return dict(
        hidden_dim=D, map_dim=DM, vocab=V, pad_value=0,
        pos_enc=make_pos_encoding(MAXLEN, D),
        word_embed=nrm(ks[0], (V, D)),
        enc_w1=nrm(ks[1], (D, D)), enc_b1=jnp.zeros((D,)),
        enc_w2=nrm(ks[2], (D, D)), enc_b2=jnp.zeros((D,)),
        dec_w1=nrm(ks[3], (D, D)), dec_b1=jnp.zeros((D,)),
        dec_w2=nrm(ks[4], (D, D)), dec_b2=jnp.zeros((D,)),
        prop_enc_w1=nrm(ks[5], (D, D)), prop_enc_b1=jnp.zeros((D,)),
        prop_enc_w2=nrm(ks[6], (D, D)), prop_enc_b2=jnp.zeros((D,)),
        word_pred_w=nrm(ks[7], (D, V)), word_pred_b=jnp.zeros((V,)),
        pe_w=nrm(ks[8], (D,)), pe_b=jnp.zeros((D,)),          # property_embed Linear(1, D)
        pp_seg=nrm(ks[9], (D,)),
        property_mask=jnp.zeros((1, 1, D)),
        s2g_w1=nrm(ks[10], (D, D)), s2g_b1=jnp.zeros((D,)),
        s2g_w2=nrm(ks[11], (D, DM)), s2g_b2=jnp.zeros((DM,)),
        g2s_w1=nrm(ks[12], (D, D)), g2s_b1=jnp.zeros((D,)),
        g2s_w2=nrm(ks[13], (D, DM)), g2s_b2=jnp.zeros((DM,)),
        g2s2_w1=nrm(ks[14], (D, D)), g2s2_b1=jnp.zeros((D,)),
        g2s2_w2=nrm(ks[15], (D, DM)), g2s2_b2=jnp.zeros((DM,)),
        logit_scale=jnp.ones((1,)), logit_scale2=jnp.ones((1,)), logit_scale3=jnp.ones((1,)),
        mask_key=jax.random.PRNGKey(1),
        # TODO(synk): feature_dict is derived from ./datasets/pair.csv in the reference;
        # a fixed small dict exercises the mask-propagation logic.
        feature_dict={0: [1], 2: [3]},
    )


# ----------------------------- model pieces (JAX glue) -----------------------------

def process_p_inputs(p, props, masked, sm=True):
    """Build the property-token inputs and masks consumed by the fused property kernel."""
    B, P = props.shape
    D = p["hidden_dim"]
    prop_feat = props[..., None] * p["pe_w"].reshape(1, 1, D) + p["pe_b"].reshape(1, 1, D)
    if not masked:
        mpm = jnp.zeros((B, P), jnp.float32)
    else:
        # TODO(synk): np.random.choice over [0.2,0.3,0.5,0.4] replaced by a fixed rate 0.3
        mpm = jax.random.bernoulli(p["mask_key"], 0.3, (B, P)).astype(jnp.float32)
        if sm:
            for kf, vals in p["feature_dict"].items():
                src = mpm[:, kf] == 1.0
                for vv in vals:
                    mpm = mpm.at[:, vv].set(jnp.where(src, 1.0, mpm[:, vv]))
    pmask = jnp.broadcast_to(p["property_mask"], (B, P, D))
    properties = jnp.where(mpm[..., None] == 1.0, pmask, prop_feat)
    xt = properties + p["pos_enc"][:P][None]
    return xt, mpm


def frag_weights(frag_idx, S):
    """One-hot-sum weights + counts so the masked gather-mean becomes a single matmul."""
    mask = (frag_idx != -1).astype(jnp.float32)            # (B, Nf, Fl)
    idx = jnp.clip(frag_idx, 0, None)
    one_hot = jax.nn.one_hot(idx, S, dtype=jnp.float32)    # (B, Nf, Fl, S) — glue
    W = jnp.sum(one_hot * mask[..., None], axis=2)         # (B, Nf, S)
    cnt = jnp.sum(mask, axis=2, keepdims=True)             # (B, Nf, 1)
    return W, cnt


def prop_model_forward(p, fi, ft, inputs, input_mask, targets, target_mask, props):
    B, S = inputs.shape
    _, T = targets.shape
    D, DM, V = p["hidden_dim"], p["map_dim"], p["vocab"]
    pe = p["pos_enc"]

    # ---- SMILES branch: embed, (stub) encoder + mapping_s2g, one fused kernel -------------
    # TODO(synk): input_mask / target_mask would feed the real smiencoder transformer stack.
    emb_in = jnp.take(p["word_embed"], inputs, axis=0) + pe[:S][None]          # (B,S,D)
    emb_t = jnp.take(p["word_embed"], targets, axis=0) + pe[:T][None]          # (B,T,D)
    emb_cat = jnp.concatenate([emb_in.reshape(B * S, D), emb_t.reshape(B * T, D)], axis=0)
    enc_out, zz_raw, zz_n_flat = enc_s2g(emb_cat, p)
    enc_in = enc_out[:B * S].reshape(B, S, D)
    # TODO(synk): smiencoder.calculate_z (VAE encoder + reparameterization) stubbed as mean pool
    z = jnp.mean(enc_in, axis=1)
    kl_loss_z = jnp.asarray(0.0, jnp.float32)
    zz = zz_raw[:B * S].reshape(B, S, DM)         # unnormalized: only feeds fragment pooling
    zz2 = zz_raw[B * S:].reshape(B, T, DM)
    smiles_features = zz_n_flat[:B * S].reshape(B, S, DM)
    smiles_features_aug = zz_n_flat[B * S:].reshape(B, T, DM)
    smi_all = smiles_features[:, 0, :]
    smi_aug_all = smiles_features_aug[:, 0, :]

    # ---- LM head over the (stub) decoder --------------------------------------------------
    # TODO(synk): causal smiencoder.decoder conditioned on z replaced by a per-token MLP stub
    scores = dec_head(emb_t.reshape(B * T, D), p).reshape(B, T, V)
    shifted = scores[:, :-1, :]
    labels = targets[:, 1:]
    logp = jax.nn.log_softmax(shifted, axis=-1)
    nll = -jnp.take_along_axis(logp, labels[..., None], axis=-1)[..., 0]
    valid = (labels != p["pad_value"]).astype(jnp.float32)
    lm_loss = jnp.sum(nll * valid) / jnp.maximum(jnp.sum(valid), 1.0)

    # ---- property branch: masked + unmasked variants batched on one 2B grid ---------------
    xt_u, mpm_u = process_p_inputs(p, props, masked=False)
    xt_m, mpm_m = process_p_inputs(p, props, masked=True)
    # TODO(synk): the reference resamples while torch.equal(vm, vm2); skipped (stubbed mask)
    xt_cat = jnp.concatenate([xt_u, xt_m], axis=0)          # (2B, P, D)
    mpm_cat = jnp.concatenate([mpm_u, mpm_m], axis=0)       # (2B, P)
    phar_tok_cat, phar_glob_cat = property_branch(xt_cat, mpm_cat, p)
    phar_features_1, phar_features_2 = phar_tok_cat[:B], phar_tok_cat[B:]   # normalized (B,P,DM)
    phar_1_all, phar_2_all = phar_glob_cat[:B], phar_glob_cat[B:]           # normalized (B,DM)

    logit_scale = jnp.minimum(jnp.exp(p["logit_scale"]), 100.0)
    logit_scale2 = jnp.minimum(jnp.exp(p["logit_scale2"]), 100.0)
    logit_scale3 = jnp.minimum(jnp.exp(p["logit_scale3"]), 100.0)

    # ---- global CLIP logits: one Gram-matrix kernel, slice the 8 (B,B) blocks -------------
    X = jnp.concatenate([phar_1_all, phar_2_all, smi_all, smi_aug_all], axis=0)   # (4B, DM)
    G = gram_logits(X, logit_scale)
    a_logits_per_phar_1 = G[0:B, 2 * B:3 * B]
    a_logits_per_phar_2 = G[B:2 * B, 2 * B:3 * B]
    a_logits_per_phar_1_aug = G[0:B, 3 * B:4 * B]
    a_logits_per_phar_2_aug = G[B:2 * B, 3 * B:4 * B]
    a_logits_per_smiles_1 = G[2 * B:3 * B, 0:B]
    a_logits_per_smiles_2 = G[2 * B:3 * B, B:2 * B]
    a_logits_per_smiles_1_aug = G[3 * B:4 * B, 0:B]
    a_logits_per_smiles_2_aug = G[3 * B:4 * B, B:2 * B]

    # ---- fragment pooling (gather as one-hot matmul, fused L2 norm) -----------------------
    Wi, ci = frag_weights(fi, S)
    Wt, ct = frag_weights(ft, T)
    if S == T:
        frag_cat = frag_pool(jnp.concatenate([Wi, Wt], axis=0),
                             jnp.concatenate([zz, zz2], axis=0),
                             jnp.concatenate([ci, ct], axis=0))
        frag_i, frag_t_emb = frag_cat[:B], frag_cat[B:]
    else:
        frag_i = frag_pool(Wi, zz, ci)
        frag_t_emb = frag_pool(Wt, zz2, ct)

    # ---- token-level max/mean similarity: 4 bidirectional launches cover 24 reference calls
    fwd_s, bwd_s = bidirectional_masked_similarity(phar_tok_cat, smiles_features, logit_scale2)
    logits_per_phar_1, logits_per_phar_2 = fwd_s[:B], fwd_s[B:]
    logits_per_smiles_1, logits_per_smiles_2 = bwd_s[:B].T, bwd_s[B:].T

    fwd_sa, bwd_sa = bidirectional_masked_similarity(phar_tok_cat, smiles_features_aug,
                                                     logit_scale2)
    logits_per_phar_1_aug, logits_per_phar_2_aug = fwd_sa[:B], fwd_sa[B:]
    logits_per_smiles_1_aug, logits_per_smiles_2_aug = bwd_sa[:B].T, bwd_sa[B:].T

    fwd_fi, bwd_fi = bidirectional_masked_similarity(phar_tok_cat, frag_i, logit_scale3)
    f_logits_per_phar_1, f_logits_per_phar_2 = fwd_fi[:B], fwd_fi[B:]
    f_logits_per_smiles_1, f_logits_per_smiles_2 = bwd_fi[:B].T, bwd_fi[B:].T

    fwd_ft, bwd_ft = bidirectional_masked_similarity(phar_tok_cat, frag_t_emb, logit_scale3)
    f_logits_per_phar_1_aug, f_logits_per_phar_2_aug = fwd_ft[:B], fwd_ft[B:]
    f_logits_per_smiles_1_aug, f_logits_per_smiles_2_aug = bwd_ft[:B].T, bwd_ft[B:].T

    # TODO(synk): if_gene branch (expand_then_fusing + dencoder + TransformerDecoder) omitted
    return {
        "logits": (logits_per_phar_1, logits_per_phar_2,
                   logits_per_smiles_1, logits_per_smiles_2),
        "logits_aug": (logits_per_phar_1_aug, logits_per_phar_2_aug,
                       logits_per_smiles_1_aug, logits_per_smiles_2_aug),
        "logits_aug_a": (a_logits_per_phar_1_aug, a_logits_per_phar_2_aug,
                         a_logits_per_smiles_1_aug, a_logits_per_smiles_2_aug,
                         a_logits_per_phar_1, a_logits_per_phar_2,
                         a_logits_per_smiles_1, a_logits_per_smiles_2),
        "logits_aug_f": (f_logits_per_phar_1_aug, f_logits_per_phar_2_aug,
                         f_logits_per_smiles_1_aug, f_logits_per_smiles_2_aug,
                         f_logits_per_phar_1, f_logits_per_phar_2,
                         f_logits_per_smiles_1, f_logits_per_smiles_2),
        "features": (smiles_features, phar_features_1, phar_features_2),
        "z_klloss": kl_loss_z,
        "lm_loss": lm_loss,
    }


# ----------------------------- driver -----------------------------

if __name__ == "__main__":
    B, S, T, P, Nf, Fl = 4, 8, 8, 8, 4, 3
    params = make_params()
    V = params["vocab"]

    key = jax.random.PRNGKey(0)
    k1, k2, k3, k4, k5 = jax.random.split(key, 5)
    inputs = jax.random.randint(k1, (B, S), 1, V)
    targets = jax.random.randint(k2, (B, T), 1, V)
    input_mask = jnp.zeros((B, S), jnp.float32)
    target_mask = jnp.zeros((B, T), jnp.float32)
    props = jax.random.normal(k3, (B, P), jnp.float32)
    fi = jax.random.randint(k4, (B, Nf, Fl), 0, S)
    fi = fi.at[:, :, -1].set(-1)      # some padded fragment slots
    ft = jax.random.randint(k5, (B, Nf, Fl), 0, S)
    ft = ft.at[:, -1, :].set(-1)      # one fully padded fragment

    out = prop_model_forward(params, fi, ft, inputs, input_mask, targets, target_mask, props)
    jax.block_until_ready(out)
    print("KERNEL_OK")
</pallas_src>

<mosaic_0001>
module attributes {stable_mosaic.version = 11 : i64} {
  func.func @_enc_s2g_kernel(%arg0: i32, %arg1: memref<64x32xf32, #tpu.memory_space<vmem>>, %arg2: memref<32x32xf32, #tpu.memory_space<vmem>>, %arg3: memref<1x32xf32, #tpu.memory_space<vmem>>, %arg4: memref<32x32xf32, #tpu.memory_space<vmem>>, %arg5: memref<1x32xf32, #tpu.memory_space<vmem>>, %arg6: memref<32x32xf32, #tpu.memory_space<vmem>>, %arg7: memref<1x32xf32, #tpu.memory_space<vmem>>, %arg8: memref<32x128xf32, #tpu.memory_space<vmem>>, %arg9: memref<1x128xf32, #tpu.memory_space<vmem>>, %arg10: memref<64x32xf32, #tpu.memory_space<vmem>>, %arg11: memref<64x128xf32, #tpu.memory_space<vmem>>, %arg12: memref<64x128xf32, #tpu.memory_space<vmem>>) attributes {dimension_semantics = [#tpu.dimension_semantics<parallel>], iteration_bounds = array<i64: 1>, scalar_prefetch = 0 : i64, scratch_operands = 0 : i64, tpu.core_type = #tpu.core_type<tc>, window_params = [{transform_indices = @transform_0, window_bounds = array<i64: 64, 32>}, {pipeline_mode = #tpu.pipeline_mode<synchronous>, transform_indices = @transform_1, window_bounds = array<i64: 32, 32>}, {pipeline_mode = #tpu.pipeline_mode<synchronous>, transform_indices = @transform_2, window_bounds = array<i64: 1, 32>}, {pipeline_mode = #tpu.pipeline_mode<synchronous>, transform_indices = @transform_3, window_bounds = array<i64: 32, 32>}, {pipeline_mode = #tpu.pipeline_mode<synchronous>, transform_indices = @transform_4, window_bounds = array<i64: 1, 32>}, {pipeline_mode = #tpu.pipeline_mode<synchronous>, transform_indices = @transform_5, window_bounds = array<i64: 32, 32>}, {pipeline_mode = #tpu.pipeline_mode<synchronous>, transform_indices = @transform_6, window_bounds = array<i64: 1, 32>}, {pipeline_mode = #tpu.pipeline_mode<synchronous>, transform_indices = @transform_7, window_bounds = array<i64: 32, 128>}, {pipeline_mode = #tpu.pipeline_mode<synchronous>, transform_indices = @transform_8, window_bounds = array<i64: 1, 128>}, {transform_indices = @transform_9, window_bounds = array<i64: 64, 32>}, {transform_indices = @transform_10, window_bounds = array<i64: 64, 128>}, {transform_indices = @transform_11, window_bounds = array<i64: 64, 128>}]} {
    %c0 = arith.constant 0 : index
    %c0_0 = arith.constant 0 : index
    %0 = vector.load %arg1[%c0, %c0_0] : memref<64x32xf32, #tpu.memory_space<vmem>>, vector<64x32xf32>
    %1 = arith.truncf %0 : vector<64x32xf32> to vector<64x32xbf16>
    %c0_1 = arith.constant 0 : index
    %c0_2 = arith.constant 0 : index
    %2 = vector.load %arg2[%c0_1, %c0_2] : memref<32x32xf32, #tpu.memory_space<vmem>>, vector<32x32xf32>
    %3 = arith.truncf %2 : vector<32x32xf32> to vector<32x32xbf16>
    %cst = arith.constant dense<0.000000e+00> : vector<64x32xf32>
    %4 = tpu.matmul %1, %3, %cst {dimension_numbers = #tpu.dot_dimension_numbers<[1], [0], [0], [1], [0, 0, 1, 1], [], []>} : vector<64x32xbf16>, vector<32x32xbf16>, vector<64x32xf32> -> vector<64x32xf32>
    %c0_3 = arith.constant 0 : index
    %c0_4 = arith.constant 0 : index
    %5 = vector.load %arg3[%c0_3, %c0_4] : memref<1x32xf32, #tpu.memory_space<vmem>>, vector<1x32xf32>
    %6 = vector.broadcast %5 : vector<1x32xf32> to vector<64x32xf32>
    %7 = arith.addf %4, %6 : vector<64x32xf32>
    %cst_5 = arith.constant 0.000000e+00 : f32
    %8 = vector.broadcast %cst_5 : f32 to vector<64x32xf32>
    %9 = arith.maximumf %7, %8 : vector<64x32xf32>
    %10 = arith.truncf %9 : vector<64x32xf32> to vector<64x32xbf16>
    %c0_6 = arith.constant 0 : index
    %c0_7 = arith.constant 0 : index
    %11 = vector.load %arg4[%c0_6, %c0_7] : memref<32x32xf32, #tpu.memory_space<vmem>>, vector<32x32xf32>
    %12 = arith.truncf %11 : vector<32x32xf32> to vector<32x32xbf16>
    %cst_8 = arith.constant dense<0.000000e+00> : vector<64x32xf32>
    %13 = tpu.matmul %10, %12, %cst_8 {dimension_numbers = #tpu.dot_dimension_numbers<[1], [0], [0], [1], [0, 0, 1, 1], [], []>} : vector<64x32xbf16>, vector<32x32xbf16>, vector<64x32xf32> -> vector<64x32xf32>
    %c0_9 = arith.constant 0 : index
    %c0_10 = arith.constant 0 : index
    %14 = vector.load %arg5[%c0_9, %c0_10] : memref<1x32xf32, #tpu.memory_space<vmem>>, vector<1x32xf32>
    %15 = vector.broadcast %14 : vector<1x32xf32> to vector<64x32xf32>
    %16 = arith.addf %13, %15 : vector<64x32xf32>
    %c0_11 = arith.constant 0 : index
    %c0_12 = arith.constant 0 : index
    %17 = vector.load %arg10[%c0_11, %c0_12] : memref<64x32xf32, #tpu.memory_space<vmem>>, vector<64x32xf32>
    tpu.vector_store %arg10[%c0_11, %c0_12], %16 {strides = array<i32>} : memref<64x32xf32, #tpu.memory_space<vmem>>, vector<64x32xf32>,
    %18 = arith.truncf %16 : vector<64x32xf32> to vector<64x32xbf16>
    %c0_13 = arith.constant 0 : index
    %c0_14 = arith.constant 0 : index
    %19 = vector.load %arg6[%c0_13, %c0_14] : memref<32x32xf32, #tpu.memory_space<vmem>>, vector<32x32xf32>
    %20 = arith.truncf %19 : vector<32x32xf32> to vector<32x32xbf16>
    %cst_15 = arith.constant dense<0.000000e+00> : vector<64x32xf32>
    %21 = tpu.matmul %18, %20, %cst_15 {dimension_numbers = #tpu.dot_dimension_numbers<[1], [0], [0], [1], [0, 0, 1, 1], [], []>} : vector<64x32xbf16>, vector<32x32xbf16>, vector<64x32xf32> -> vector<64x32xf32>
    %c0_16 = arith.constant 0 : index
    %c0_17 = arith.constant 0 : index
    %22 = vector.load %arg7[%c0_16, %c0_17] : memref<1x32xf32, #tpu.memory_space<vmem>>, vector<1x32xf32>
    %23 = vector.broadcast %22 : vector<1x32xf32> to vector<64x32xf32>
    %24 = arith.addf %21, %23 : vector<64x32xf32>
    %cst_18 = arith.constant 0.000000e+00 : f32
    %25 = vector.broadcast %cst_18 : f32 to vector<64x32xf32>
    %26 = arith.cmpf ogt, %24, %25 : vector<64x32xf32>
    %cst_19 = arith.constant 0.00999999977 : f32
    %27 = vector.broadcast %cst_19 : f32 to vector<64x32xf32>
    %28 = arith.mulf %27, %24 : vector<64x32xf32>
    %29 = arith.select %26, %24, %28 : vector<64x32xi1>, vector<64x32xf32>
    %30 = arith.truncf %29 : vector<64x32xf32> to vector<64x32xbf16>
    %c0_20 = arith.constant 0 : index
    %c0_21 = arith.constant 0 : index
    %31 = vector.load %arg8[%c0_20, %c0_21] : memref<32x128xf32, #tpu.memory_space<vmem>>, vector<32x128xf32>
    %32 = arith.truncf %31 : vector<32x128xf32> to vector<32x128xbf16>
    %cst_22 = arith.constant dense<0.000000e+00> : vector<64x128xf32>
    %33 = tpu.matmul %30, %32, %cst_22 {dimension_numbers = #tpu.dot_dimension_numbers<[1], [0], [0], [1], [0, 0, 1, 1], [], []>} : vector<64x32xbf16>, vector<32x128xbf16>, vector<64x128xf32> -> vector<64x128xf32>
    %c0_23 = arith.constant 0 : index
    %c0_24 = arith.constant 0 : index
    %34 = vector.load %arg9[%c0_23, %c0_24] : memref<1x128xf32, #tpu.memory_space<vmem>>, vector<1x128xf32>
    %35 = vector.broadcast %34 : vector<1x128xf32> to vector<64x128xf32>
    %36 = arith.addf %33, %35 : vector<64x128xf32>
    %c0_25 = arith.constant 0 : index
    %c0_26 = arith.constant 0 : index
    %37 = vector.load %arg11[%c0_25, %c0_26] : memref<64x128xf32, #tpu.memory_space<vmem>>, vector<64x128xf32>
    tpu.vector_store %arg11[%c0_25, %c0_26], %36 {strides = array<i32>} : memref<64x128xf32, #tpu.memory_space<vmem>>, vector<64x128xf32>,
    %38 = arith.mulf %36, %36 : vector<64x128xf32>
    %cst_27 = arith.constant dense<0.000000e+00> : vector<64xf32>
    %39 = vector.multi_reduction <add>, %38, %cst_27 [1] : vector<64x128xf32> to vector<64xf32>
    %40 = vector.shape_cast %39 : vector<64xf32> to vector<64x1xf32>
    %41 = math.sqrt %40 : vector<64x1xf32>
    %cst_28 = arith.constant 1.000000e-10 : f32
    %42 = vector.broadcast %cst_28 : f32 to vector<64x1xf32>
    %43 = arith.addf %41, %42 : vector<64x1xf32>
    %44 = vector.broadcast %43 : vector<64x1xf32> to vector<64x128xf32>
    %45 = arith.divf %36, %44 : vector<64x128xf32>
    %c0_29 = arith.constant 0 : index
    %c0_30 = arith.constant 0 : index
    %46 = vector.load %arg12[%c0_29, %c0_30] : memref<64x128xf32, #tpu.memory_space<vmem>>, vector<64x128xf32>
    tpu.vector_store %arg12[%c0_29, %c0_30], %45 {strides = array<i32>} : memref<64x128xf32, #tpu.memory_space<vmem>>, vector<64x128xf32>,
    return
  }
  func.func @transform_0(%arg0: i32) -> (i32, i32) {
    %c0_i32 = arith.constant 0 : i32
    %c0_i32_0 = arith.constant 0 : i32
    return %arg0, %c0_i32 : i32, i32
  }
  func.func @transform_1(%arg0: i32) -> (i32, i32) {
    %c0_i32 = arith.constant 0 : i32
    %c0_i32_0 = arith.constant 0 : i32
    %c0_i32_1 = arith.constant 0 : i32
    return %c0_i32, %c0_i32_0 : i32, i32
  }
  func.func @transform_2(%arg0: i32) -> (i32, i32) {
    %c0_i32 = arith.constant 0 : i32
    %c0_i32_0 = arith.constant 0 : i32
    %c0_i32_1 = arith.constant 0 : i32
    return %c0_i32, %c0_i32_0 : i32, i32
  }
  func.func @transform_3(%arg0: i32) -> (i32, i32) {
    %c0_i32 = arith.constant 0 : i32
    %c0_i32_0 = arith.constant 0 : i32
    %c0_i32_1 = arith.constant 0 : i32
    return %c0_i32, %c0_i32_0 : i32, i32
  }
  func.func @transform_4(%arg0: i32) -> (i32, i32) {
    %c0_i32 = arith.constant 0 : i32
    %c0_i32_0 = arith.constant 0 : i32
    %c0_i32_1 = arith.constant 0 : i32
    return %c0_i32, %c0_i32_0 : i32, i32
  }
  func.func @transform_5(%arg0: i32) -> (i32, i32) {
    %c0_i32 = arith.constant 0 : i32
    %c0_i32_0 = arith.constant 0 : i32
    %c0_i32_1 = arith.constant 0 : i32
    return %c0_i32, %c0_i32_0 : i32, i32
  }
  func.func @transform_6(%arg0: i32) -> (i32, i32) {
    %c0_i32 = arith.constant 0 : i32
    %c0_i32_0 = arith.constant 0 : i32
    %c0_i32_1 = arith.constant 0 : i32
    return %c0_i32, %c0_i32_0 : i32, i32
  }
  func.func @transform_7(%arg0: i32) -> (i32, i32) {
    %c0_i32 = arith.constant 0 : i32
    %c0_i32_0 = arith.constant 0 : i32
    %c0_i32_1 = arith.constant 0 : i32
    return %c0_i32, %c0_i32_0 : i32, i32
  }
  func.func @transform_8(%arg0: i32) -> (i32, i32) {
    %c0_i32 = arith.constant 0 : i32
    %c0_i32_0 = arith.constant 0 : i32
    %c0_i32_1 = arith.constant 0 : i32
    return %c0_i32, %c0_i32_0 : i32, i32
  }
  func.func @transform_9(%arg0: i32) -> (i32, i32) {
    %c0_i32 = arith.constant 0 : i32
    %c0_i32_0 = arith.constant 0 : i32
    return %arg0, %c0_i32 : i32, i32
  }
  func.func @transform_10(%arg0: i32) -> (i32, i32) {
    %c0_i32 = arith.constant 0 : i32
    %c0_i32_0 = arith.constant 0 : i32
    return %arg0, %c0_i32 : i32, i32
  }
  func.func @transform_11(%arg0: i32) -> (i32, i32) {
    %c0_i32 = arith.constant 0 : i32
    %c0_i32_0 = arith.constant 0 : i32
    return %arg0, %c0_i32 : i32, i32
  }
}

</mosaic_0001>

<llo_original>
// kernel: tpu_custom_call.1
$region0: #{tpu_custom_call.1}
  #allocation0 [shape = 'u32[]', space=smem, size = 0x4, offset = 0x4, fixed_abs, tag = 'smem constant byte address 0x4 - core index']
  #allocation1 [shape = 'u32[72,128]{1,0:T(1,128)}', space=vmem, size = 0x9000, scoped, tag = 'internal scratch']
  %s0 = inlined_call_operand.vmem [shape: f32[64,32], index: 0, kind: input, shape index: {}]
  %s1 = inlined_call_operand.vmem [shape: f32[32,32], index: 1, kind: input, shape index: {}]
  %s2 = inlined_call_operand.vmem [shape: f32[1,32], index: 2, kind: input, shape index: {}]
  %s3 = inlined_call_operand.vmem [shape: f32[32,32], index: 3, kind: input, shape index: {}]
  %s4 = inlined_call_operand.vmem [shape: f32[1,32], index: 4, kind: input, shape index: {}]
  %s5 = inlined_call_operand.vmem [shape: f32[32,32], index: 5, kind: input, shape index: {}]
  %s6 = inlined_call_operand.vmem [shape: f32[1,32], index: 6, kind: input, shape index: {}]
  %s7 = inlined_call_operand.hbm [shape: f32[32,128], index: 7, kind: input, shape index: {}]
  %s8 = inlined_call_operand.vmem [shape: f32[1,128], index: 8, kind: input, shape index: {}]
  %s9 = inlined_call_operand.vmem [shape: f32[64,32], index: 9, kind: output, shape index: {0}]
  %s10 = inlined_call_operand.hbm [shape: f32[64,128], index: 10, kind: output, shape index: {1}]
  %s11 = inlined_call_operand.hbm [shape: f32[64,128], index: 11, kind: output, shape index: {2}]
  %12 = xla_tuple %s9, %s10, %s11
  %s13 = sld [smem:[#allocation0]]
  $region66: #{tpu_custom_call.1} parent=0
    _
  %s15 = ssub.s32 1, %s13
  %s16 = scalar_select 0, %s15, %s13
  $region1: #{tpu_custom_call.1} parent=0
    #allocation2 [shape = 'u8[16384]{0}', space=vmem, size = 0x4000, scoped, tag = 'input window, operand 7, single buffered']
    #allocation3 [shape = 's32[1]{0}', space=sflag, size = 0x4, scoped, tag = 'scoped memory for tpu_custom_call.1']
    #allocation4 [shape = 's32[1]{0}', space=sflag, size = 0x4, scoped, tag = 'scoped memory for tpu_custom_call.1']
    #allocation5 [shape = 'u8[32768]{0}', space=vmem, size = 0x8000, scoped, tag = 'output window, operand 1, single buffered']
    #allocation6 [shape = 'u8[32768]{0}', space=vmem, size = 0x8000, scoped, tag = 'output window, operand 2, single buffered']
    #allocation7 [shape = 's32[1]{0}', space=sflag, size = 0x4, scoped, tag = 'scoped memory for tpu_custom_call.1']
    %17 = vsyncpa [#allocation3], 0
    %18 = vsyncpa [#allocation4], 0
    %19 = vsyncpa [#allocation7], 0
    // Predicated region
    $region2: #{tpu_custom_call.1} parent=1 // pred_check
      _
    $region3: #{tpu_custom_call.1} parent=1 // pred_check_branch
      %21 = sbr.rel (0) target = $region5
    $region4: #{tpu_custom_call.1} parent=1 // pred_region
      _
    $region5: #{tpu_custom_call.1} parent=1 // pred_fallthru
      _
    // Predicated region
    $region6: #{tpu_custom_call.1} parent=1 // pred_check
      _
    $region7: #{tpu_custom_call.1} parent=1 // pred_check_branch
      %23 = sbr.rel (0) target = $region9
    $region8: #{tpu_custom_call.1} parent=1 // pred_region
      _
    $region9: #{tpu_custom_call.1} parent=1 // pred_fallthru
      _
    // Predicated region
    $region10: #{tpu_custom_call.1} parent=1 // pred_check
      _
    $region11: #{tpu_custom_call.1} parent=1 // pred_check_branch
      %25 = sbr.rel (0) target = $region13
    $region12: #{tpu_custom_call.1} parent=1 // pred_region
      _
    $region13: #{tpu_custom_call.1} parent=1 // pred_fallthru
      _
    // Predicated region
    $region14: #{tpu_custom_call.1} parent=1 // pred_check
      _
    $region15: #{tpu_custom_call.1} parent=1 // pred_check_branch
      %27 = sbr.rel (0) target = $region17
    $region16: #{tpu_custom_call.1} parent=1 // pred_region
      _
    $region17: #{tpu_custom_call.1} parent=1 // pred_fallthru
      _
    // Predicated region
    $region18: #{tpu_custom_call.1} parent=1 // pred_check
      _
    $region19: #{tpu_custom_call.1} parent=1 // pred_check_branch
      %29 = sbr.rel (0) target = $region21
    $region20: #{tpu_custom_call.1} parent=1 // pred_region
      _
    $region21: #{tpu_custom_call.1} parent=1 // pred_fallthru
      _
    // Predicated region
    $region22: #{tpu_custom_call.1} parent=1 // pred_check
      _
    $region23: #{tpu_custom_call.1} parent=1 // pred_check_branch
      %31 = sbr.rel (0) target = $region25
    $region24: #{tpu_custom_call.1} parent=1 // pred_region
      _
    $region25: #{tpu_custom_call.1} parent=1 // pred_fallthru
      _
    // Predicated region
    $region26: #{tpu_custom_call.1} parent=1 // pred_check
      _
    $region27: #{tpu_custom_call.1} parent=1 // pred_check_branch
      %33 = sbr.rel (0) target = $region29
    $region28: #{tpu_custom_call.1} parent=1 // pred_region
      _
    $region29: #{tpu_custom_call.1} parent=1 // pred_fallthru
      _
    // Predicated region
    $region30: #{tpu_custom_call.1} parent=1 // pred_check
      _
    $region31: #{tpu_custom_call.1} parent=1 // pred_check_branch
      %35 = sbr.rel (0) target = $region33
    $region32: #{tpu_custom_call.1} parent=1 // pred_region
      %37 = vsyncadd [#allocation3], 0
      %s38 = sshll.u32 %s7, 4
      %s39 = int_to_ptr.hbm [resolvable:$true] %s38
      %s40 = sshll.u32 [#allocation2], 4
      %s41 = int_to_ptr.vmem [resolvable:$true] %s40
      %46 = dma.hbm_to_vmem [thread:$0]  %s39, 512, %s41, [#allocation3], 128, 128, 8
    $region33: #{tpu_custom_call.1} parent=1 // pred_fallthru
      _
    // Predicated region
    $region34: #{tpu_custom_call.1} parent=1 // pred_check
      _
    $region35: #{tpu_custom_call.1} parent=1 // pred_check_branch
      %48 = sbr.rel (0) target = $region37
    $region36: #{tpu_custom_call.1} parent=1 // pred_region
      _
    $region37: #{tpu_custom_call.1} parent=1 // pred_fallthru
      _
    // Predicated region
    $region38: #{tpu_custom_call.1} parent=1 // pred_check
      _
    $region39: #{tpu_custom_call.1} parent=1 // pred_check_branch
      %50 = sbr.rel (0) target = $region41
    $region40: #{tpu_custom_call.1} parent=1 // pred_region
      %52 = dma.done [#allocation3], 512
    $region41: #{tpu_custom_call.1} parent=1 // pred_fallthru
      _
    %v54 = vld [vmem:[%s0] sm:$0xff]
    %v55 = vld [vmem:[%s0 + $0x8] sm:$0xff]
    %v56 = vld [vmem:[%s0 + $0x10] sm:$0xff]
    %v57 = vld [vmem:[%s0 + $0x18] sm:$0xff]
    %v58 = vld [vmem:[%s0 + $0x20] sm:$0xff]
    %v59 = vld [vmem:[%s0 + $0x28] sm:$0xff]
    %v60 = vld [vmem:[%s0 + $0x30] sm:$0xff]
    %v61 = vld [vmem:[%s0 + $0x38] sm:$0xff]
    %v62 = vpack.c.bf16 %v55, %v54
    %v63 = vpack.c.bf16 %v57, %v56
    %v64 = vpack.c.bf16 %v59, %v58
    %v65 = vpack.c.bf16 %v61, %v60
    %v66 = vld [vmem:[%s1] sm:$0xff]
    %v67 = vld [vmem:[%s1 + $0x8] sm:$0xff]
    %v68 = vld [vmem:[%s1 + $0x10] sm:$0xff]
    %v69 = vld [vmem:[%s1 + $0x18] sm:$0xff]
    %v70 = vpack.c.bf16 %v67, %v66
    %v71 = vpack.c.bf16 %v69, %v68
    %v72 = vld [vmem:[%s2] sm:$0x1]
    %v74 = vperm.slane %v72, 0
    %vm76 = vcmask 261120
    %v78 = vsel %vm76, %v62, 0
    %v81 = vsel %vm76, %v63, 0
    %v84 = vsel %vm76, %v64, 0
    %v87 = vsel %vm76, %v65, 0
    %89 = vmatpush.bf16.msra.mxu0 0
    %90 = vmatpush.bf16.msra.mxu0 0
    %91 = vmatpush.bf16.msra.mxu0 0
    %92 = vmatpush.bf16.msra.mxu0 0
    %93 = vmatpush.bf16.msra.mxu0 0
    %94 = vmatpush.bf16.msra.mxu0 0
    %95 = vmatpush.bf16.msra.mxu0 %v71
    %96 = vmatpush.bf16.msra.mxu0 %v70
    %97 = vmatmul.bf16.gmra.mxu0 %v78
    %v98 = vpop.f32.mrf.mxu0
    %v99 = vadd.f32 %v74, %v98
    %v100 = vpop.f32.mrf.mxu0
    %v101 = vadd.f32 %v74, %v100
    %102 = vmatmul.bf16.gmra.mxu0 %v81
    %v103 = vpop.f32.mrf.mxu0
    %v104 = vadd.f32 %v74, %v103
    %v105 = vpop.f32.mrf.mxu0
    %v106 = vadd.f32 %v74, %v105
    %107 = vmatmul.bf16.gmra.mxu0 %v84
    %v108 = vpop.f32.mrf.mxu0
    %v109 = vadd.f32 %v74, %v108
    %v110 = vpop.f32.mrf.mxu0
    %v111 = vadd.f32 %v74, %v110
    %112 = vmatmul.bf16.gmra.mxu0 %v87
    %v113 = vpop.f32.mrf.mxu0
    %v114 = vadd.f32 %v74, %v113
    %v115 = vpop.f32.mrf.mxu0
    %v116 = vadd.f32 %v74, %v115
    %117 = vdwg.mxu0
    %v118 = vmax.f32 %v99, 0.0
    %v119 = vmax.f32 %v101, 0.0
    %v120 = vmax.f32 %v104, 0.0
    %v121 = vmax.f32 %v106, 0.0
    %v122 = vmax.f32 %v109, 0.0
    %v123 = vmax.f32 %v111, 0.0
    %v124 = vmax.f32 %v114, 0.0
    %v125 = vmax.f32 %v116, 0.0
    %v126 = vpack.c.bf16 %v119, %v118
    %v127 = vpack.c.bf16 %v121, %v120
    %v128 = vpack.c.bf16 %v123, %v122
    %v129 = vpack.c.bf16 %v125, %v124
    %v130 = vld [vmem:[%s3] sm:$0xff]
    %v131 = vld [vmem:[%s3 + $0x8] sm:$0xff]
    %v132 = vld [vmem:[%s3 + $0x10] sm:$0xff]
    %v133 = vld [vmem:[%s3 + $0x18] sm:$0xff]
    %v134 = vpack.c.bf16 %v131, %v130
    %v135 = vpack.c.bf16 %v133, %v132
    %v136 = vld [vmem:[%s4] sm:$0x1]
    %v138 = vperm.slane %v136, 0
    %v141 = vsel %vm76, %v126, 0
    %v144 = vsel %vm76, %v127, 0
    %v147 = vsel %vm76, %v128, 0
    %v150 = vsel %vm76, %v129, 0
    %152 = vmatpush.bf16.msra.mxu0 0
    %153 = vmatpush.bf16.msra.mxu0 0
    %154 = vmatpush.bf16.msra.mxu0 0
    %155 = vmatpush.bf16.msra.mxu0 0
    %156 = vmatpush.bf16.msra.mxu0 0
    %157 = vmatpush.bf16.msra.mxu0 0
    %158 = vmatpush.bf16.msra.mxu0 %v135
    %159 = vmatpush.bf16.msra.mxu0 %v134
    %160 = vmatmul.bf16.gmra.mxu0 %v141
    %v161 = vpop.f32.mrf.mxu0
    %v162 = vadd.f32 %v138, %v161
    %v163 = vpop.f32.mrf.mxu0
    %v164 = vadd.f32 %v138, %v163
    %165 = vmatmul.bf16.gmra.mxu0 %v144
    %v166 = vpop.f32.mrf.mxu0
    %v167 = vadd.f32 %v138, %v166
    %v168 = vpop.f32.mrf.mxu0
    %v169 = vadd.f32 %v138, %v168
    %170 = vmatmul.bf16.gmra.mxu0 %v147
    %v171 = vpop.f32.mrf.mxu0
    %v172 = vadd.f32 %v138, %v171
    %v173 = vpop.f32.mrf.mxu0
    %v174 = vadd.f32 %v138, %v173
    %175 = vmatmul.bf16.gmra.mxu0 %v150
    %v176 = vpop.f32.mrf.mxu0
    %v177 = vadd.f32 %v138, %v176
    %v178 = vpop.f32.mrf.mxu0
    %v179 = vadd.f32 %v138, %v178
    %180 = vdwg.mxu0
    %181 = vst.msk [vmem:[%s9] sm:$0xff] %vm76, %v162
    %182 = vst.msk [vmem:[%s9 + $0x8] sm:$0xff] %vm76, %v164
    %183 = vst.msk [vmem:[%s9 + $0x10] sm:$0xff] %vm76, %v167
    %184 = vst.msk [vmem:[%s9 + $0x18] sm:$0xff] %vm76, %v169
    %185 = vst.msk [vmem:[%s9 + $0x20] sm:$0xff] %vm76, %v172
    %186 = vst.msk [vmem:[%s9 + $0x28] sm:$0xff] %vm76, %v174
    %187 = vst.msk [vmem:[%s9 + $0x30] sm:$0xff] %vm76, %v177
    %188 = vst.msk [vmem:[%s9 + $0x38] sm:$0xff] %vm76, %v179
    %v189 = vpack.c.bf16 %v164, %v162
    %v190 = vpack.c.bf16 %v169, %v167
    %v191 = vpack.c.bf16 %v174, %v172
    %v192 = vpack.c.bf16 %v179, %v177
    %v193 = vld [vmem:[%s5] sm:$0xff]
    %v194 = vld [vmem:[%s5 + $0x8] sm:$0xff]
    %v195 = vld [vmem:[%s5 + $0x10] sm:$0xff]
    %v196 = vld [vmem:[%s5 + $0x18] sm:$0xff]
    %v197 = vpack.c.bf16 %v194, %v193
    %v198 = vpack.c.bf16 %v196, %v195
    %v199 = vld [vmem:[%s6] sm:$0x1]
    %v201 = vperm.slane %v199, 0
    %v204 = vsel %vm76, %v189, 0
    %v207 = vsel %vm76, %v190, 0
    %v210 = vsel %vm76, %v191, 0
    %v213 = vsel %vm76, %v192, 0
    %215 = vmatpush.bf16.msra.mxu0 0
    %216 = vmatpush.bf16.msra.mxu0 0
    %217 = vmatpush.bf16.msra.mxu0 0
    %218 = vmatpush.bf16.msra.mxu0 0
    %219 = vmatpush.bf16.msra.mxu0 0
    %220 = vmatpush.bf16.msra.mxu0 0
    %221 = vmatpush.bf16.msra.mxu0 %v198
    %222 = vmatpush.bf16.msra.mxu0 %v197
    %223 = vmatmul.bf16.gmra.mxu0 %v204
    %v224 = vpop.f32.mrf.mxu0
    %v225 = vadd.f32 %v201, %v224
    %v226 = vpop.f32.mrf.mxu0
    %v227 = vadd.f32 %v201, %v226
    %228 = vmatmul.bf16.gmra.mxu0 %v207
    %v229 = vpop.f32.mrf.mxu0
    %v230 = vadd.f32 %v201, %v229
    %v231 = vpop.f32.mrf.mxu0
    %v232 = vadd.f32 %v201, %v231
    %233 = vmatmul.bf16.gmra.mxu0 %v210
    %v234 = vpop.f32.mrf.mxu0
    %v235 = vadd.f32 %v201, %v234
    %v236 = vpop.f32.mrf.mxu0
    %v237 = vadd.f32 %v201, %v236
    %238 = vmatmul.bf16.gmra.mxu0 %v213
    %v239 = vpop.f32.mrf.mxu0
    %v240 = vadd.f32 %v201, %v239
    %v241 = vpop.f32.mrf.mxu0
    %v242 = vadd.f32 %v201, %v241
    %243 = vdwg.mxu0
    %vm244 = vcmp.gt.f32.partialorder %v225, 0.0
    %vm245 = vcmp.gt.f32.partialorder %v227, 0.0
    %vm246 = vcmp.gt.f32.partialorder %v230, 0.0
    %vm247 = vcmp.gt.f32.partialorder %v232, 0.0
    %vm248 = vcmp.gt.f32.partialorder %v235, 0.0
    %vm249 = vcmp.gt.f32.partialorder %v237, 0.0
    %vm250 = vcmp.gt.f32.partialorder %v240, 0.0
    %vm251 = vcmp.gt.f32.partialorder %v242, 0.0
    %v252 = vmul.f32 %v225, 0.01
    %v253 = vmul.f32 %v227, 0.01
    %v254 = vmul.f32 %v230, 0.01
    %v255 = vmul.f32 %v232, 0.01
    %v256 = vmul.f32 %v235, 0.01
    %v257 = vmul.f32 %v237, 0.01
    %v258 = vmul.f32 %v240, 0.01
    %v259 = vmul.f32 %v242, 0.01
    %v260 = vsel %vm244, %v225, %v252
    %v261 = vsel %vm245, %v227, %v253
    %v262 = vsel %vm246, %v230, %v254
    %v263 = vsel %vm247, %v232, %v255
    %v264 = vsel %vm248, %v235, %v256
    %v265 = vsel %vm249, %v237, %v257
    %v266 = vsel %vm250, %v240, %v258
    %v267 = vsel %vm251, %v242, %v259
    %v268 = vpack.c.bf16 %v261, %v260
    %v269 = vpack.c.bf16 %v263, %v262
    %v270 = vpack.c.bf16 %v265, %v264
    %v271 = vpack.c.bf16 %v267, %v266
    %v272 = vld [vmem:[#allocation2] sm:$0xff]
    %v273 = vld [vmem:[#allocation2 + $0x8] sm:$0xff]
    %v274 = vld [vmem:[#allocation2 + $0x10] sm:$0xff]
    %v275 = vld [vmem:[#allocation2 + $0x18] sm:$0xff]
    %v276 = vpack.c.bf16 %v273, %v272
    %v277 = vpack.c.bf16 %v275, %v274
    %v278 = vld [vmem:[%s8] sm:$0x1]
    %v280 = vperm.slane %v278, 0
    %v283 = vsel %vm76, %v268, 0
    %v286 = vsel %vm76, %v269, 0
    %v289 = vsel %vm76, %v270, 0
    %v292 = vsel %vm76, %v271, 0
    %294 = vmatpush.bf16.msra.mxu0 0
    %295 = vmatpush.bf16.msra.mxu0 0
    %296 = vmatpush.bf16.msra.mxu0 0
    %297 = vmatpush.bf16.msra.mxu0 0
    %298 = vmatpush.bf16.msra.mxu0 0
    %299 = vmatpush.bf16.msra.mxu0 0
    %300 = vmatpush.bf16.msra.mxu0 %v277
    %301 = vmatpush.bf16.msra.mxu0 %v276
    %302 = vmatmul.bf16.gmra.mxu0 %v283
    %v303 = vpop.f32.mrf.mxu0
    %v304 = vadd.f32 %v280, %v303
    %v305 = vpop.f32.mrf.mxu0
    %v306 = vadd.f32 %v280, %v305
    %307 = vmatmul.bf16.gmra.mxu0 %v286
    %v308 = vpop.f32.mrf.mxu0
    %v309 = vadd.f32 %v280, %v308
    %v310 = vpop.f32.mrf.mxu0
    %v311 = vadd.f32 %v280, %v310
    %312 = vmatmul.bf16.gmra.mxu0 %v289
    %v313 = vpop.f32.mrf.mxu0
    %v314 = vadd.f32 %v280, %v313
    %v315 = vpop.f32.mrf.mxu0
    %v316 = vadd.f32 %v280, %v315
    %317 = vmatmul.bf16.gmra.mxu0 %v292
    %v318 = vpop.f32.mrf.mxu0
    %v319 = vadd.f32 %v280, %v318
    %v320 = vpop.f32.mrf.mxu0
    %v321 = vadd.f32 %v280, %v320
    %322 = vdwg.mxu0
    %323 = vst [vmem:[#allocation5] sm:$0xff] %v304
    %324 = vst [vmem:[#allocation5 + $0x8] sm:$0xff] %v306
    %325 = vst [vmem:[#allocation5 + $0x10] sm:$0xff] %v309
    %326 = vst [vmem:[#allocation5 + $0x18] sm:$0xff] %v311
    %327 = vst [vmem:[#allocation5 + $0x20] sm:$0xff] %v314
    %328 = vst [vmem:[#allocation5 + $0x28] sm:$0xff] %v316
    %329 = vst [vmem:[#allocation5 + $0x30] sm:$0xff] %v319
    %330 = vst [vmem:[#allocation5 + $0x38] sm:$0xff] %v321
    %v331 = vmul.f32 %v304, %v304
    %v332 = vmul.f32 %v306, %v306
    %v333 = vmul.f32 %v309, %v309
    %v334 = vmul.f32 %v311, %v311
    %v335 = vmul.f32 %v314, %v314
    %v336 = vmul.f32 %v316, %v316
    %v337 = vmul.f32 %v319, %v319
    %v338 = vmul.f32 %v321, %v321
    %339 = vadd.xlane.f32.xlu0 %v331
    %v340 = vpop.xlane.xlu0 %339
    %341 = vadd.xlane.f32.xlu0 %v332
    %v342 = vpop.xlane.xlu0 %341
    %343 = vadd.xlane.f32.xlu0 %v333
    %v344 = vpop.xlane.xlu0 %343
    %345 = vadd.xlane.f32.xlu0 %v334
    %v346 = vpop.xlane.xlu0 %345
    %347 = vadd.xlane.f32.xlu0 %v335
    %v348 = vpop.xlane.xlu0 %347
    %349 = vadd.xlane.f32.xlu0 %v336
    %v350 = vpop.xlane.xlu0 %349
    %351 = vadd.xlane.f32.xlu0 %v337
    %v352 = vpop.xlane.xlu0 %351
    %353 = vadd.xlane.f32.xlu0 %v338
    %v354 = vpop.xlane.xlu0 %353
    %v355 = vrsqrt.pop %v340
    %v356 = vmul.f32 %v355, %v340
    %v357 = vmul.f32 %v356, %v355
    %v358 = vmul.f32 0.5, %v357
    %v359 = vsub.f32 1.5, %v358
    %v360 = vmul.f32 %v355, %v359
    %v361 = vmul.f32 %v340, %v360
    %vm362 = vcmp.eq.f32.partialorder %v340, inf
    %v363 = vsel %vm362, %v340, %v361
    %vm364 = vcmp.eq.f32.partialorder %v340, 0.0
    %v365 = vand.u32 %v340, 2147483648
    %v366 = vsel %vm364, %v365, %v363
    %v367 = vrsqrt.pop %v342
    %v368 = vmul.f32 %v367, %v342
    %v369 = vmul.f32 %v368, %v367
    %v370 = vmul.f32 0.5, %v369
    %v371 = vsub.f32 1.5, %v370
    %v372 = vmul.f32 %v367, %v371
    %v373 = vmul.f32 %v342, %v372
    %vm374 = vcmp.eq.f32.partialorder %v342, inf
    %v375 = vsel %vm374, %v342, %v373
    %vm376 = vcmp.eq.f32.partialorder %v342, 0.0
    %v377 = vand.u32 %v342, 2147483648
    %v378 = vsel %vm376, %v377, %v375
    %v379 = vrsqrt.pop %v344
    %v380 = vmul.f32 %v379, %v344
    %v381 = vmul.f32 %v380, %v379
    %v382 = vmul.f32 0.5, %v381
    %v383 = vsub.f32 1.5, %v382
    %v384 = vmul.f32 %v379, %v383
    %v385 = vmul.f32 %v344, %v384
    %vm386 = vcmp.eq.f32.partialorder %v344, inf
    %v387 = vsel %vm386, %v344, %v385
    %vm388 = vcmp.eq.f32.partialorder %v344, 0.0
    %v389 = vand.u32 %v344, 2147483648
    %v390 = vsel %vm388, %v389, %v387
    %v391 = vrsqrt.pop %v346
    %v392 = vmul.f32 %v391, %v346
    %v393 = vmul.f32 %v392, %v391
    %v394 = vmul.f32 0.5, %v393
    %v395 = vsub.f32 1.5, %v394
    %v396 = vmul.f32 %v391, %v395
    %v397 = vmul.f32 %v346, %v396
    %vm398 = vcmp.eq.f32.partialorder %v346, inf
    %v399 = vsel %vm398, %v346, %v397
    %vm400 = vcmp.eq.f32.partialorder %v346, 0.0
    %v401 = vand.u32 %v346, 2147483648
    %v402 = vsel %vm400, %v401, %v399
    %v403 = vrsqrt.pop %v348
    %v404 = vmul.f32 %v403, %v348
    %v405 = vmul.f32 %v404, %v403
    %v406 = vmul.f32 0.5, %v405
    %v407 = vsub.f32 1.5, %v406
    %v408 = vmul.f32 %v403, %v407
    %v409 = vmul.f32 %v348, %v408
    %vm410 = vcmp.eq.f32.partialorder %v348, inf
    %v411 = vsel %vm410, %v348, %v409
    %vm412 = vcmp.eq.f32.partialorder %v348, 0.0
    %v413 = vand.u32 %v348, 2147483648
    %v414 = vsel %vm412, %v413, %v411
    %v415 = vrsqrt.pop %v350
    %v416 = vmul.f32 %v415, %v350
    %v417 = vmul.f32 %v416, %v415
    %v418 = vmul.f32 0.5, %v417
    %v419 = vsub.f32 1.5, %v418
    %v420 = vmul.f32 %v415, %v419
    %v421 = vmul.f32 %v350, %v420
    %vm422 = vcmp.eq.f32.partialorder %v350, inf
    %v423 = vsel %vm422, %v350, %v421
    %vm424 = vcmp.eq.f32.partialorder %v350, 0.0
    %v425 = vand.u32 %v350, 2147483648
    %v426 = vsel %vm424, %v425, %v423
    %v427 = vrsqrt.pop %v352
    %v428 = vmul.f32 %v427, %v352
    %v429 = vmul.f32 %v428, %v427
    %v430 = vmul.f32 0.5, %v429
    %v431 = vsub.f32 1.5, %v430
    %v432 = vmul.f32 %v427, %v431
    %v433 = vmul.f32 %v352, %v432
    %vm434 = vcmp.eq.f32.partialorder %v352, inf
    %v435 = vsel %vm434, %v352, %v433
    %vm436 = vcmp.eq.f32.partialorder %v352, 0.0
    %v437 = vand.u32 %v352, 2147483648
    %v438 = vsel %vm436, %v437, %v435
    %v439 = vrsqrt.pop %v354
    %v440 = vmul.f32 %v439, %v354
    %v441 = vmul.f32 %v440, %v439
    %v442 = vmul.f32 0.5, %v441
    %v443 = vsub.f32 1.5, %v442
    %v444 = vmul.f32 %v439, %v443
    %v445 = vmul.f32 %v354, %v444
    %vm446 = vcmp.eq.f32.partialorder %v354, inf
    %v447 = vsel %vm446, %v354, %v445
    %vm448 = vcmp.eq.f32.partialorder %v354, 0.0
    %v449 = vand.u32 %v354, 2147483648
    %v450 = vsel %vm448, %v449, %v447
    %v451 = vadd.f32 %v366, 1e-10
    %v452 = vadd.f32 %v378, 1e-10
    %v453 = vadd.f32 %v390, 1e-10
    %v454 = vadd.f32 %v402, 1e-10
    %v455 = vadd.f32 %v414, 1e-10
    %v456 = vadd.f32 %v426, 1e-10
    %v457 = vadd.f32 %v438, 1e-10
    %v458 = vadd.f32 %v450, 1e-10
    %v459 = vrcp.pop %v451
    %v460 = vmul.f32 %v451, %v459
    %v461 = vsub.f32 1.0, %v460
    %v462 = vmul.f32 %v459, %v461
    %v463 = vadd.f32 %v459, %v462
    %vm464 = vweird.f32 %v451
    %vm465 = vweird.f32 %v459
    %vm466 = vmor %vm464, %vm465
    %v467 = vsel %vm466, %v459, %v463
    %v468 = vand.u32 2147483647, %v451
    %vm469 = vcmp.eq.f32.partialorder %v468, 8.507059e+37
    %v470 = vand.u32 %v451, 2147483648
    %v471 = vor.u32 1.1754944e-38, %v470
    %v472 = vsel %vm469, %v471, %v467
    %v473 = vmul.f32 %v304, %v472
    %v474 = vrcp.pop %v452
    %v475 = vmul.f32 %v452, %v474
    %v476 = vsub.f32 1.0, %v475
    %v477 = vmul.f32 %v474, %v476
    %v478 = vadd.f32 %v474, %v477
    %vm479 = vweird.f32 %v452
    %vm480 = vweird.f32 %v474
    %vm481 = vmor %vm479, %vm480
    %v482 = vsel %vm481, %v474, %v478
    %v483 = vand.u32 2147483647, %v452
    %vm484 = vcmp.eq.f32.partialorder %v483, 8.507059e+37
    %v485 = vand.u32 %v452, 2147483648
    %v486 = vor.u32 1.1754944e-38, %v485
    %v487 = vsel %vm484, %v486, %v482
    %v488 = vmul.f32 %v306, %v487
    %v489 = vrcp.pop %v453
    %v490 = vmul.f32 %v453, %v489
    %v491 = vsub.f32 1.0, %v490
    %v492 = vmul.f32 %v489, %v491
    %v493 = vadd.f32 %v489, %v492
    %vm494 = vweird.f32 %v453
    %vm495 = vweird.f32 %v489
    %vm496 = vmor %vm494, %vm495
    %v497 = vsel %vm496, %v489, %v493
    %v498 = vand.u32 2147483647, %v453
    %vm499 = vcmp.eq.f32.partialorder %v498, 8.507059e+37
    %v500 = vand.u32 %v453, 2147483648
    %v501 = vor.u32 1.1754944e-38, %v500
    %v502 = vsel %vm499, %v501, %v497
    %v503 = vmul.f32 %v309, %v502
    %v504 = vrcp.pop %v454
    %v505 = vmul.f32 %v454, %v504
    %v506 = vsub.f32 1.0, %v505
    %v507 = vmul.f32 %v504, %v506
    %v508 = vadd.f32 %v504, %v507
    %vm509 = vweird.f32 %v454
    %vm510 = vweird.f32 %v504
    %vm511 = vmor %vm509, %vm510
    %v512 = vsel %vm511, %v504, %v508
    %v513 = vand.u32 2147483647, %v454
    %vm514 = vcmp.eq.f32.partialorder %v513, 8.507059e+37
    %v515 = vand.u32 %v454, 2147483648
    %v516 = vor.u32 1.1754944e-38, %v515
    %v517 = vsel %vm514, %v516, %v512
    %v518 = vmul.f32 %v311, %v517
    %v519 = vrcp.pop %v455
    %v520 = vmul.f32 %v455, %v519
    %v521 = vsub.f32 1.0, %v520
    %v522 = vmul.f32 %v519, %v521
    %v523 = vadd.f32 %v519, %v522
    %vm524 = vweird.f32 %v455
    %vm525 = vweird.f32 %v519
    %vm526 = vmor %vm524, %vm525
    %v527 = vsel %vm526, %v519, %v523
    %v528 = vand.u32 2147483647, %v455
    %vm529 = vcmp.eq.f32.partialorder %v528, 8.507059e+37
    %v530 = vand.u32 %v455, 2147483648
    %v531 = vor.u32 1.1754944e-38, %v530
    %v532 = vsel %vm529, %v531, %v527
    %v533 = vmul.f32 %v314, %v532
    %v534 = vrcp.pop %v456
    %v535 = vmul.f32 %v456, %v534
    %v536 = vsub.f32 1.0, %v535
    %v537 = vmul.f32 %v534, %v536
    %v538 = vadd.f32 %v534, %v537
    %vm539 = vweird.f32 %v456
    %vm540 = vweird.f32 %v534
    %vm541 = vmor %vm539, %vm540
    %v542 = vsel %vm541, %v534, %v538
    %v543 = vand.u32 2147483647, %v456
    %vm544 = vcmp.eq.f32.partialorder %v543, 8.507059e+37
    %v545 = vand.u32 %v456, 2147483648
    %v546 = vor.u32 1.1754944e-38, %v545
    %v547 = vsel %vm544, %v546, %v542
    %v548 = vmul.f32 %v316, %v547
    %v549 = vrcp.pop %v457
    %v550 = vmul.f32 %v457, %v549
    %v551 = vsub.f32 1.0, %v550
    %v552 = vmul.f32 %v549, %v551
    %v553 = vadd.f32 %v549, %v552
    %vm554 = vweird.f32 %v457
    %vm555 = vweird.f32 %v549
    %vm556 = vmor %vm554, %vm555
    %v557 = vsel %vm556, %v549, %v553
    %v558 = vand.u32 2147483647, %v457
    %vm559 = vcmp.eq.f32.partialorder %v558, 8.507059e+37
    %v560 = vand.u32 %v457, 2147483648
    %v561 = vor.u32 1.1754944e-38, %v560
    %v562 = vsel %vm559, %v561, %v557
    %v563 = vmul.f32 %v319, %v562
    %v564 = vrcp.pop %v458
    %v565 = vmul.f32 %v458, %v564
    %v566 = vsub.f32 1.0, %v565
    %v567 = vmul.f32 %v564, %v566
    %v568 = vadd.f32 %v564, %v567
    %vm569 = vweird.f32 %v458
    %vm570 = vweird.f32 %v564
    %vm571 = vmor %vm569, %vm570
    %v572 = vsel %vm571, %v564, %v568
    %v573 = vand.u32 2147483647, %v458
    %vm574 = vcmp.eq.f32.partialorder %v573, 8.507059e+37
    %v575 = vand.u32 %v458, 2147483648
    %v576 = vor.u32 1.1754944e-38, %v575
    %v577 = vsel %vm574, %v576, %v572
    %v578 = vmul.f32 %v321, %v577
    %579 = vst [vmem:[#allocation6] sm:$0xff] %v473
    %580 = vst [vmem:[#allocation6 + $0x8] sm:$0xff] %v488
    %581 = vst [vmem:[#allocation6 + $0x10] sm:$0xff] %v503
    %582 = vst [vmem:[#allocation6 + $0x18] sm:$0xff] %v518
    %583 = vst [vmem:[#allocation6 + $0x20] sm:$0xff] %v533
    %584 = vst [vmem:[#allocation6 + $0x28] sm:$0xff] %v548
    %585 = vst [vmem:[#allocation6 + $0x30] sm:$0xff] %v563
    %586 = vst [vmem:[#allocation6 + $0x38] sm:$0xff] %v578
    // Predicated region
    $region42: #{tpu_custom_call.1} parent=1 // pred_check
      _
    $region43: #{tpu_custom_call.1} parent=1 // pred_check_branch
      %588 = sbr.rel (0) target = $region45
    $region44: #{tpu_custom_call.1} parent=1 // pred_region
      _
    $region45: #{tpu_custom_call.1} parent=1 // pred_fallthru
      _
    // Predicated region
    $region46: #{tpu_custom_call.1} parent=1 // pred_check
      _
    $region47: #{tpu_custom_call.1} parent=1 // pred_check_branch
      %590 = sbr.rel (0) target = $region49
    $region48: #{tpu_custom_call.1} parent=1 // pred_region
      %592 = vsyncadd [#allocation4], 0
      %s593 = sshll.u32 [#allocation5], 4
      %s594 = int_to_ptr.vmem [resolvable:$true] %s593
      %s595 = sshll.u32 %s10, 4
      %s596 = int_to_ptr.hbm [resolvable:$true] %s595
      %601 = dma.vmem_to_hbm [thread:$0]  %s594, 1024, %s596, [#allocation4], 128, 128, 8
    $region49: #{tpu_custom_call.1} parent=1 // pred_fallthru
      _
    // Predicated region
    $region50: #{tpu_custom_call.1} parent=1 // pred_check
      _
    $region51: #{tpu_custom_call.1} parent=1 // pred_check_branch
      %603 = sbr.rel (0) target = $region53
    $region52: #{tpu_custom_call.1} parent=1 // pred_region
      %605 = vsyncadd [#allocation7], 0
      %s606 = sshll.u32 [#allocation6], 4
      %s607 = int_to_ptr.vmem [resolvable:$true] %s606
      %s608 = sshll.u32 %s11, 4
      %s609 = int_to_ptr.hbm [resolvable:$true] %s608
      %614 = dma.vmem_to_hbm [thread:$0]  %s607, 1024, %s609, [#allocation7], 128, 128, 8
    $region53: #{tpu_custom_call.1} parent=1 // pred_fallthru
      _
    // Predicated region
    $region54: #{tpu_custom_call.1} parent=1 // pred_check
      _
    $region55: #{tpu_custom_call.1} parent=1 // pred_check_branch
      %616 = sbr.rel (0) target = $region57
    $region56: #{tpu_custom_call.1} parent=1 // pred_region
      _
    $region57: #{tpu_custom_call.1} parent=1 // pred_fallthru
      _
    // Predicated region
    $region58: #{tpu_custom_call.1} parent=1 // pred_check
      _
    $region59: #{tpu_custom_call.1} parent=1 // pred_check_branch
      %618 = sbr.rel (0) target = $region61
    $region60: #{tpu_custom_call.1} parent=1 // pred_region
      %620 = dma.done [#allocation4], 1024
    $region61: #{tpu_custom_call.1} parent=1 // pred_fallthru
      _
    // Predicated region
    $region62: #{tpu_custom_call.1} parent=1 // pred_check
      _
    $region63: #{tpu_custom_call.1} parent=1 // pred_check_branch
      %622 = sbr.rel (0) target = $region65
    $region64: #{tpu_custom_call.1} parent=1 // pred_region
      %624 = dma.done [#allocation7], 1024
    $region65: #{tpu_custom_call.1} parent=1 // pred_fallthru
      _
    %625 = vsyncpa [#allocation3], 1
    %626 = vsyncpa [#allocation4], 1
    %627 = vsyncpa [#allocation7], 1

</llo_original>
